<compile_context>
chip_gen: v7x
topology: tpu7x:2x2x1
jax: 0.10.0
libtpu: 0.0.40
codegen_flags: <defaults>
</compile_context>

<pallas_src>
import functools

import jax
import jax.numpy as jnp
from jax.experimental import pallas as pl
from jax.experimental.pallas import tpu as pltpu


def _mlp_kernel(x_ref, ln_ref, gate_ref, up_ref, down_ref, out_ref,
                xn_ref, acc_ref, *, apply_rmsnorm, eps):
    """One (token_tile, intermediate_tile) grid step of the SwiGLU MLP."""
    i = pl.program_id(1)

    @pl.when(i == 0)
    def _init():
        acc_ref[...] = jnp.zeros_like(acc_ref)

    if apply_rmsnorm:
        # Normalize this token tile once (i == 0) and reuse for every
        # intermediate tile; the result persists in the xn VMEM scratch.
        @pl.when(i == 0)
        def _norm():
            xf = x_ref[...].astype(jnp.float32)
            var = jnp.mean(xf * xf, axis=-1, keepdims=True)
            xf = xf * jax.lax.rsqrt(var + eps) * ln_ref[...].astype(jnp.float32)
            xn_ref[...] = xf.astype(xn_ref.dtype)

        x = xn_ref[...]
    else:
        x = x_ref[...]

    # gate / up projections for this intermediate tile (MXU, f32 accumulate).
    g = jnp.dot(x, gate_ref[...], preferred_element_type=jnp.float32)
    u = jnp.dot(x, up_ref[...], preferred_element_type=jnp.float32)
    # SiLU(gate) * up in f32 (EUP exp + VPU mul).
    h = g * (1.0 / (1.0 + jnp.exp(-g))) * u
    # Partial down_proj contribution of this intermediate tile.
    acc_ref[...] += jnp.dot(h.astype(down_ref.dtype), down_ref[...],
                            preferred_element_type=jnp.float32)

    @pl.when(i == pl.num_programs(1) - 1)
    def _finalize():
        out_ref[...] = acc_ref[...].astype(out_ref.dtype)


def _pick_tile(n, target, align):
    """Largest divisor of n that is a multiple of `align` and <= target,
    falling back to the full dim (always legal as a block shape)."""
    if n <= target:
        return n
    if n % align != 0:
        return n
    t = (target // align) * align
    while t > align and n % t != 0:
        t -= align
    return t if n % t == 0 else n


def neuron_llama_mlp(x, gate_w, up_w, down_w, rmsnorm_weight=None,
                     eps=1e-6, block_m=256, block_i=512):
    """Fused (optional RMSNorm) -> gate/up -> SiLU*up -> down_proj.

    x:       [B, S, hidden]
    gate_w:  [hidden, intermediate]
    up_w:    [hidden, intermediate]
    down_w:  [intermediate, hidden]
    Returns (output [B, S, hidden] in x.dtype, residual=None).
    """
    B, S, H = x.shape
    I = gate_w.shape[1]
    M = B * S
    x2 = x.reshape(M, H)

    apply_rmsnorm = rmsnorm_weight is not None
    ln = (rmsnorm_weight if apply_rmsnorm
          else jnp.ones((H,), dtype=jnp.float32))
    ln = ln.reshape(1, H).astype(jnp.float32)

    tm = _pick_tile(M, block_m, 8)     # token tile (sublane-aligned)
    ti = _pick_tile(I, block_i, 128)   # intermediate tile (lane-aligned)
    grid = (M // tm, I // ti)

    kernel = functools.partial(_mlp_kernel,
                               apply_rmsnorm=apply_rmsnorm, eps=eps)

    out2 = pl.pallas_call(
        kernel,
        out_shape=jax.ShapeDtypeStruct((M, H), x.dtype),
        grid_spec=pltpu.PrefetchScalarGridSpec(
            num_scalar_prefetch=0,
            grid=grid,
            in_specs=[
                pl.BlockSpec((tm, H), lambda m, i: (m, 0)),   # x tokens
                pl.BlockSpec((1, H), lambda m, i: (0, 0)),    # rmsnorm weight
                pl.BlockSpec((H, ti), lambda m, i: (0, i)),   # gate_w
                pl.BlockSpec((H, ti), lambda m, i: (0, i)),   # up_w
                pl.BlockSpec((ti, H), lambda m, i: (i, 0)),   # down_w
            ],
            out_specs=pl.BlockSpec((tm, H), lambda m, i: (m, 0)),
            scratch_shapes=[
                pltpu.VMEM((tm, H), x.dtype),        # normalized x (per m-tile)
                pltpu.VMEM((tm, H), jnp.float32),    # down_proj accumulator
            ],
        ),
        compiler_params=pltpu.CompilerParams(
            dimension_semantics=("parallel", "arbitrary"),
            vmem_limit_bytes=56 * 1024 * 1024),
    )(x2, ln, gate_w, up_w, down_w)

    return out2.reshape(B, S, H), None


def _reference(x, gate_w, up_w, down_w, rmsnorm_weight, eps):
    xf = x.astype(jnp.float32)
    if rmsnorm_weight is not None:
        var = jnp.mean(xf * xf, axis=-1, keepdims=True)
        xf = xf * jax.lax.rsqrt(var + eps) * rmsnorm_weight.astype(jnp.float32)
    g = xf @ gate_w.astype(jnp.float32)
    u = xf @ up_w.astype(jnp.float32)
    h = jax.nn.silu(g) * u
    return (h @ down_w.astype(jnp.float32)).astype(x.dtype)


if __name__ == "__main__":
    key = jax.random.PRNGKey(0)
    B, S, H, I = 2, 64, 128, 512   # small but tileable shapes

    k1, k2, k3, k4, k5 = jax.random.split(key, 5)
    x = jax.random.normal(k1, (B, S, H), dtype=jnp.float32)
    gate_w = jax.random.normal(k2, (H, I), dtype=jnp.float32) / jnp.sqrt(H)
    up_w = jax.random.normal(k3, (H, I), dtype=jnp.float32) / jnp.sqrt(H)
    down_w = jax.random.normal(k4, (I, H), dtype=jnp.float32) / jnp.sqrt(I)
    ln_w = 1.0 + 0.1 * jax.random.normal(k5, (H,), dtype=jnp.float32)

    # small block sizes so the (token, intermediate) grid + accumulator path
    # is actually exercised: grid = (2, 2)
    out, residual = neuron_llama_mlp(x, gate_w, up_w, down_w,
                                     rmsnorm_weight=ln_w, eps=1e-6,
                                     block_m=64, block_i=256)
    out = jax.block_until_ready(out)

    ref = _reference(x, gate_w, up_w, down_w, ln_w, 1e-6)

    assert residual is None
    assert out.shape == (B, S, H)
    assert out.dtype == x.dtype
    assert jnp.allclose(out, ref, atol=2e-2, rtol=2e-2), (
        float(jnp.max(jnp.abs(out - ref))))

    print("KERNEL_OK")
</pallas_src>

<mosaic_0001>
module attributes {stable_mosaic.version = 11 : i64} {
  func.func @_mlp_kernel(%arg0: i32, %arg1: i32, %arg2: memref<64x128xf32, #tpu.memory_space<vmem>>, %arg3: memref<1x128xf32, #tpu.memory_space<vmem>>, %arg4: memref<128x256xf32, #tpu.memory_space<vmem>>, %arg5: memref<128x256xf32, #tpu.memory_space<vmem>>, %arg6: memref<256x128xf32, #tpu.memory_space<vmem>>, %arg7: memref<64x128xf32, #tpu.memory_space<vmem>>, %arg8: memref<64x128xf32, #tpu.memory_space<vmem>>, %arg9: memref<64x128xf32, #tpu.memory_space<vmem>>) attributes {dimension_semantics = [#tpu.dimension_semantics<parallel>, #tpu.dimension_semantics<arbitrary>], iteration_bounds = array<i64: 2, 2>, scalar_prefetch = 0 : i64, scratch_operands = 2 : i64, tpu.core_type = #tpu.core_type<tc>, window_params = [{transform_indices = @transform_0, window_bounds = array<i64: 64, 128>}, {pipeline_mode = #tpu.pipeline_mode<synchronous>, transform_indices = @transform_1, window_bounds = array<i64: 1, 128>}, {transform_indices = @transform_2, window_bounds = array<i64: 128, 256>}, {transform_indices = @transform_3, window_bounds = array<i64: 128, 256>}, {transform_indices = @transform_4, window_bounds = array<i64: 256, 128>}, {transform_indices = @transform_5, window_bounds = array<i64: 64, 128>}]} {
    %c0_i32 = arith.constant 0 : i32
    %0 = arith.cmpi eq, %arg1, %c0_i32 : i32
    %1 = arith.extui %0 : i1 to i32
    %c0_i32_0 = arith.constant 0 : i32
    %2 = arith.cmpi ne, %1, %c0_i32_0 : i32
    scf.if %2 {
      %cst_20 = arith.constant 0.000000e+00 : f32
      %28 = vector.broadcast %cst_20 : f32 to vector<64x128xf32>
      %c0_21 = arith.constant 0 : index
      %c0_22 = arith.constant 0 : index
      %29 = vector.load %arg9[%c0_21, %c0_22] : memref<64x128xf32, #tpu.memory_space<vmem>>, vector<64x128xf32>
      tpu.vector_store %arg9[%c0_21, %c0_22], %28 {strides = array<i32>} : memref<64x128xf32, #tpu.memory_space<vmem>>, vector<64x128xf32>,
    } else {
    }
    %c0_i32_1 = arith.constant 0 : i32
    %3 = arith.cmpi eq, %arg1, %c0_i32_1 : i32
    %4 = arith.extui %3 : i1 to i32
    %c0_i32_2 = arith.constant 0 : i32
    %5 = arith.cmpi ne, %4, %c0_i32_2 : i32
    scf.if %5 {
      %c0_20 = arith.constant 0 : index
      %c0_21 = arith.constant 0 : index
      %28 = vector.load %arg2[%c0_20, %c0_21] : memref<64x128xf32, #tpu.memory_space<vmem>>, vector<64x128xf32>
      %29 = arith.mulf %28, %28 : vector<64x128xf32>
      %cst_22 = arith.constant dense<0.000000e+00> : vector<64xf32>
      %30 = vector.multi_reduction <add>, %29, %cst_22 [1] : vector<64x128xf32> to vector<64xf32>
      %31 = vector.shape_cast %30 : vector<64xf32> to vector<64x1xf32>
      %cst_23 = arith.constant 1.280000e+02 : f32
      %32 = vector.broadcast %cst_23 : f32 to vector<64x1xf32>
      %33 = arith.divf %31, %32 : vector<64x1xf32>
      %cst_24 = arith.constant 9.99999997E-7 : f32
      %34 = vector.broadcast %cst_24 : f32 to vector<64x1xf32>
      %35 = arith.addf %33, %34 : vector<64x1xf32>
      %36 = math.rsqrt %35 : vector<64x1xf32>
      %37 = vector.broadcast %36 : vector<64x1xf32> to vector<64x128xf32>
      %38 = arith.mulf %28, %37 : vector<64x128xf32>
      %c0_25 = arith.constant 0 : index
      %c0_26 = arith.constant 0 : index
      %39 = vector.load %arg3[%c0_25, %c0_26] : memref<1x128xf32, #tpu.memory_space<vmem>>, vector<1x128xf32>
      %40 = vector.broadcast %39 : vector<1x128xf32> to vector<64x128xf32>
      %41 = arith.mulf %38, %40 : vector<64x128xf32>
      %c0_27 = arith.constant 0 : index
      %c0_28 = arith.constant 0 : index
      %42 = vector.load %arg8[%c0_27, %c0_28] : memref<64x128xf32, #tpu.memory_space<vmem>>, vector<64x128xf32>
      tpu.vector_store %arg8[%c0_27, %c0_28], %41 {strides = array<i32>} : memref<64x128xf32, #tpu.memory_space<vmem>>, vector<64x128xf32>,
    } else {
    }
    %c0 = arith.constant 0 : index
    %c0_3 = arith.constant 0 : index
    %6 = vector.load %arg8[%c0, %c0_3] : memref<64x128xf32, #tpu.memory_space<vmem>>, vector<64x128xf32>
    %c0_4 = arith.constant 0 : index
    %c0_5 = arith.constant 0 : index
    %7 = vector.load %arg4[%c0_4, %c0_5] : memref<128x256xf32, #tpu.memory_space<vmem>>, vector<128x256xf32>
    %cst = arith.constant dense<0.000000e+00> : vector<64x256xf32>
    %8 = tpu.matmul %6, %7, %cst {dimension_numbers = #tpu.dot_dimension_numbers<[1], [0], [0], [1], [0, 0, 1, 1], [], []>} : vector<64x128xf32>, vector<128x256xf32>, vector<64x256xf32> -> vector<64x256xf32>
    %c0_6 = arith.constant 0 : index
    %c0_7 = arith.constant 0 : index
    %9 = vector.load %arg5[%c0_6, %c0_7] : memref<128x256xf32, #tpu.memory_space<vmem>>, vector<128x256xf32>
    %cst_8 = arith.constant dense<0.000000e+00> : vector<64x256xf32>
    %10 = tpu.matmul %6, %9, %cst_8 {dimension_numbers = #tpu.dot_dimension_numbers<[1], [0], [0], [1], [0, 0, 1, 1], [], []>} : vector<64x128xf32>, vector<128x256xf32>, vector<64x256xf32> -> vector<64x256xf32>
    %cst_9 = arith.constant 0.000000e+00 : f32
    %11 = vector.broadcast %cst_9 : f32 to vector<64x256xf32>
    %12 = arith.subf %11, %8 : vector<64x256xf32>
    %13 = math.exp %12 : vector<64x256xf32>
    %cst_10 = arith.constant 1.000000e+00 : f32
    %14 = vector.broadcast %cst_10 : f32 to vector<64x256xf32>
    %15 = arith.addf %14, %13 : vector<64x256xf32>
    %cst_11 = arith.constant 1.000000e+00 : f32
    %16 = vector.broadcast %cst_11 : f32 to vector<64x256xf32>
    %17 = arith.divf %16, %15 : vector<64x256xf32>
    %18 = arith.mulf %8, %17 : vector<64x256xf32>
    %19 = arith.mulf %18, %10 : vector<64x256xf32>
    %c0_12 = arith.constant 0 : index
    %c0_13 = arith.constant 0 : index
    %20 = vector.load %arg9[%c0_12, %c0_13] : memref<64x128xf32, #tpu.memory_space<vmem>>, vector<64x128xf32>
    %c0_14 = arith.constant 0 : index
    %c0_15 = arith.constant 0 : index
    %21 = vector.load %arg6[%c0_14, %c0_15] : memref<256x128xf32, #tpu.memory_space<vmem>>, vector<256x128xf32>
    %cst_16 = arith.constant dense<0.000000e+00> : vector<64x128xf32>
    %22 = tpu.matmul %19, %21, %cst_16 {dimension_numbers = #tpu.dot_dimension_numbers<[1], [0], [0], [1], [0, 0, 1, 1], [], []>} : vector<64x256xf32>, vector<256x128xf32>, vector<64x128xf32> -> vector<64x128xf32>
    %23 = arith.addf %20, %22 : vector<64x128xf32>
    %c0_17 = arith.constant 0 : index
    %c0_18 = arith.constant 0 : index
    %24 = vector.load %arg9[%c0_17, %c0_18] : memref<64x128xf32, #tpu.memory_space<vmem>>, vector<64x128xf32>
    tpu.vector_store %arg9[%c0_17, %c0_18], %23 {strides = array<i32>} : memref<64x128xf32, #tpu.memory_space<vmem>>, vector<64x128xf32>,
    %c1_i32 = arith.constant 1 : i32
    %25 = arith.cmpi eq, %arg1, %c1_i32 : i32
    %26 = arith.extui %25 : i1 to i32
    %c0_i32_19 = arith.constant 0 : i32
    %27 = arith.cmpi ne, %26, %c0_i32_19 : i32
    scf.if %27 {
      %c0_20 = arith.constant 0 : index
      %c0_21 = arith.constant 0 : index
      %28 = vector.load %arg9[%c0_20, %c0_21] : memref<64x128xf32, #tpu.memory_space<vmem>>, vector<64x128xf32>
      %c0_22 = arith.constant 0 : index
      %c0_23 = arith.constant 0 : index
      %29 = vector.load %arg7[%c0_22, %c0_23] : memref<64x128xf32, #tpu.memory_space<vmem>>, vector<64x128xf32>
      tpu.vector_store %arg7[%c0_22, %c0_23], %28 {strides = array<i32>} : memref<64x128xf32, #tpu.memory_space<vmem>>, vector<64x128xf32>,
    } else {
    }
    return
  }
  func.func @transform_0(%arg0: i32, %arg1: i32) -> (i32, i32) {
    %c0_i32 = arith.constant 0 : i32
    %c0_i32_0 = arith.constant 0 : i32
    return %arg0, %c0_i32 : i32, i32
  }
  func.func @transform_1(%arg0: i32, %arg1: i32) -> (i32, i32) {
    %c0_i32 = arith.constant 0 : i32
    %c0_i32_0 = arith.constant 0 : i32
    %c0_i32_1 = arith.constant 0 : i32
    return %c0_i32, %c0_i32_0 : i32, i32
  }
  func.func @transform_2(%arg0: i32, %arg1: i32) -> (i32, i32) {
    %c0_i32 = arith.constant 0 : i32
    %c0_i32_0 = arith.constant 0 : i32
    return %c0_i32, %arg1 : i32, i32
  }
  func.func @transform_3(%arg0: i32, %arg1: i32) -> (i32, i32) {
    %c0_i32 = arith.constant 0 : i32
    %c0_i32_0 = arith.constant 0 : i32
    return %c0_i32, %arg1 : i32, i32
  }
  func.func @transform_4(%arg0: i32, %arg1: i32) -> (i32, i32) {
    %c0_i32 = arith.constant 0 : i32
    %c0_i32_0 = arith.constant 0 : i32
    return %arg1, %c0_i32 : i32, i32
  }
  func.func @transform_5(%arg0: i32, %arg1: i32) -> (i32, i32) {
    %c0_i32 = arith.constant 0 : i32
    %c0_i32_0 = arith.constant 0 : i32
    return %arg0, %c0_i32 : i32, i32
  }
}

</mosaic_0001>

<llo_original>
// kernel: tpu_custom_call.1
$region0: #{tpu_custom_call.1}
  #allocation0 [shape = 'u32[]', space=smem, size = 0x4, offset = 0x4, fixed_abs, tag = 'smem constant byte address 0x4 - core index']
  #allocation1 [shape = 'u32[144,128]{1,0:T(1,128)}', space=vmem, size = 0x12000, scoped, tag = 'internal scratch']
  #allocation2 [shape = 'f32[64,128]{1,0:T(8,128)}', space=vmem, size = 0x8000, scoped, tag = 'scratch operand']
  #allocation3 [shape = 'f32[64,128]{1,0:T(8,128)}', space=vmem, size = 0x8000, scoped, tag = 'scratch operand']
  %s0 = inlined_call_operand.hbm [shape: f32[128,128], index: 0, kind: input, shape index: {}]
  %s1 = inlined_call_operand.vmem [shape: f32[1,128], index: 1, kind: input, shape index: {}]
  %s2 = inlined_call_operand.hbm [shape: f32[128,512], index: 2, kind: input, shape index: {}]
  %s3 = inlined_call_operand.hbm [shape: f32[128,512], index: 3, kind: input, shape index: {}]
  %s4 = inlined_call_operand.hbm [shape: f32[512,128], index: 4, kind: input, shape index: {}]
  %s5 = inlined_call_operand.hbm [shape: f32[128,128], index: 5, kind: output, shape index: {}]
  %s6 = sld [smem:[#allocation0]]
  $region77: #{tpu_custom_call.1} parent=0
    _
  %s8 = ssub.s32 1, %s6
  %s9 = scalar_select 0, %s8, %s6
  $region1: #{tpu_custom_call.1} parent=0
    #allocation4 [shape = 'u8[65536]{0}', space=vmem, size = 0x10000, scoped, tag = 'input window, operand 0']
    #allocation5 [shape = 's32[2]{0}', space=sflag, size = 0x8, scoped, tag = 'scoped memory for tpu_custom_call.1']
    #allocation6 [shape = 's32[2]{0}', space=sflag, size = 0x8, scoped, tag = 'scoped memory for tpu_custom_call.1']
    #allocation7 [shape = 'u8[262144]{0}', space=vmem, size = 0x40000, scoped, tag = 'input window, operand 2']
    #allocation8 [shape = 's32[2]{0}', space=sflag, size = 0x8, scoped, tag = 'scoped memory for tpu_custom_call.1']
    #allocation9 [shape = 'u8[262144]{0}', space=vmem, size = 0x40000, scoped, tag = 'input window, operand 3']
    #allocation10 [shape = 'u8[262144]{0}', space=vmem, size = 0x40000, scoped, tag = 'input window, operand 4']
    #allocation11 [shape = 's32[2]{0}', space=sflag, size = 0x8, scoped, tag = 'scoped memory for tpu_custom_call.1']
    #allocation12 [shape = 'u8[65536]{0}', space=vmem, size = 0x10000, scoped, tag = 'output window, operand 0']
    %10 = vsyncpa [#allocation5], 0
    %s11 = scalar_lea.sflag [#allocation5], 1
    %12 = vsyncpa %s11, 0
    %13 = vsyncpa [#allocation8], 0
    %s14 = scalar_lea.sflag [#allocation8], 1
    %15 = vsyncpa %s14, 0
    %16 = vsyncpa [#allocation11], 0
    %s17 = scalar_lea.sflag [#allocation11], 1
    %18 = vsyncpa %s17, 0
    %19 = vsyncpa [#allocation6], 0
    %s20 = scalar_lea.sflag [#allocation6], 1
    %21 = vsyncpa %s20, 0
    loop: start=0, step=1, limit=6
    $region2: #{tpu_custom_call.1} parent=1 // loop_pre_header
      _
    $region3: #{tpu_custom_call.1} parent=1 // loop_header
      %s23 = sphi 0, %s27
      %p24 = scmp.ge.s32.totalorder %s23, 6
      %s30 = sphi 0, %s42
      %s31 = sphi 0, %s38
      %s32 = sphi 0, %s30
      %s33 = sphi 0, %s31
      %s34 = sphi 0, %s32
      %s35 = sphi 0, %s33
      %s45 = sphi 0, %s47
      %s48 = sphi 0, %s45
      %s49 = sphi 0, %s48
      %s65 = sphi 0, %s49
      %s69 = sphi 0, %s69
      %s71 = sphi 0, %s69
      %s72 = sphi 0, %s71
      %s86 = sphi 0, %s72
      %s92 = sphi 0, %s94
      %s95 = sphi 0, %s92
      %s96 = sphi 0, %s95
      %s112 = sphi 0, %s96
      %s118 = sphi 0, %s120
      %s121 = sphi 0, %s118
      %s122 = sphi 0, %s121
      %s138 = sphi 0, %s122
      %s144 = sphi 0, %s146
      %s147 = sphi 0, %s144
      %s148 = sphi 0, %s147
      %s164 = sphi 0, %s148
      %s170 = sphi 0, %s172
      %s173 = sphi 0, %s170
      %s174 = sphi 0, %s173
      %s190 = sphi 0, %s174
    $region4: #{tpu_custom_call.1} parent=1 // loop_header_branch
      %26 = sbr.rel (%p24) target = $region8
    $region5: #{tpu_custom_call.1} parent=1 // loop_body
      %s28 = ssub.s32 %s23, 1
      %s29 = ssub.s32 %s23, 2
      %s36 = sadd.s32 1, %s31
      %p37 = scmp.ge.s32.totalorder %s36, 2
      %s38 = scalar_select %p37, 0, %s36
      %s39 = sadd.s32 1, %s30
      %s40 = scalar_select %p37, %s39, %s30
      %p41 = scmp.ge.s32.totalorder %s40, 2
      %s42 = scalar_select %p41, 0, %s40
      %s43 = ssub.s32 %s30, %s42
      %p44 = scmp.eq.s32.totalorder %s43, 0
      %s46 = sadd.s32 %s45, 1
      %s47 = scalar_select %p44, %s45, %s46
      %p50 = pneg %p44
      %p51 = scmp.eq.s32.totalorder %s23, 3
      %p52 = por %p50, %p51
      %p53 = scmp.ne.s32.totalorder %s45, %s48
      %p54 = scmp.eq.s32.totalorder %s23, 0
      %p55 = por %p53, %p54
      %p56 = scmp.ne.s32.totalorder %s45, %s48
      %p57 = scmp.eq.s32.totalorder %s28, 3
      %p58 = por %p56, %p57
      %p59 = scmp.ne.s32.totalorder %s48, %s49
      %p60 = scmp.eq.s32.totalorder %s28, 0
      %p61 = por %p59, %p60
      %p62 = scmp.ne.s32.totalorder %s48, %s49
      %p63 = scmp.eq.s32.totalorder %s29, 3
      %p64 = por %p62, %p63
      %p66 = scmp.ne.s32.totalorder %s49, %s65
      %p67 = scmp.eq.s32.totalorder %s29, 0
      %p68 = por %p66, %p67
      %s70 = sadd.s32 %s69, 1
      %p73 = scmp.eq.s32.totalorder %s23, 3
      %p74 = scmp.ne.s32.totalorder %s69, %s71
      %p75 = scmp.eq.s32.totalorder %s23, 0
      %p76 = por %p74, %p75
      %p77 = scmp.ne.s32.totalorder %s69, %s71
      %p78 = scmp.eq.s32.totalorder %s28, 3
      %p79 = por %p77, %p78
      %p80 = scmp.ne.s32.totalorder %s71, %s72
      %p81 = scmp.eq.s32.totalorder %s28, 0
      %p82 = por %p80, %p81
      %p83 = scmp.ne.s32.totalorder %s71, %s72
      %p84 = scmp.eq.s32.totalorder %s29, 3
      %p85 = por %p83, %p84
      %p87 = scmp.ne.s32.totalorder %s72, %s86
      %p88 = scmp.eq.s32.totalorder %s29, 0
      %p89 = por %p87, %p88
      %s90 = ssub.s32 %s31, %s38
      %p91 = scmp.eq.s32.totalorder %s90, 0
      %s93 = sadd.s32 %s92, 1
      %s94 = scalar_select %p91, %s92, %s93
      %p97 = pneg %p91
      %p98 = scmp.eq.s32.totalorder %s23, 3
      %p99 = por %p97, %p98
      %p100 = scmp.ne.s32.totalorder %s92, %s95
      %p101 = scmp.eq.s32.totalorder %s23, 0
      %p102 = por %p100, %p101
      %p103 = scmp.ne.s32.totalorder %s92, %s95
      %p104 = scmp.eq.s32.totalorder %s28, 3
      %p105 = por %p103, %p104
      %p106 = scmp.ne.s32.totalorder %s95, %s96
      %p107 = scmp.eq.s32.totalorder %s28, 0
      %p108 = por %p106, %p107
      %p109 = scmp.ne.s32.totalorder %s95, %s96
      %p110 = scmp.eq.s32.totalorder %s29, 3
      %p111 = por %p109, %p110
      %p113 = scmp.ne.s32.totalorder %s96, %s112
      %p114 = scmp.eq.s32.totalorder %s29, 0
      %p115 = por %p113, %p114
      %s116 = ssub.s32 %s31, %s38
      %p117 = scmp.eq.s32.totalorder %s116, 0
      %s119 = sadd.s32 %s118, 1
      %s120 = scalar_select %p117, %s118, %s119
      %p123 = pneg %p117
      %p124 = scmp.eq.s32.totalorder %s23, 3
      %p125 = por %p123, %p124
      %p126 = scmp.ne.s32.totalorder %s118, %s121
      %p127 = scmp.eq.s32.totalorder %s23, 0
      %p128 = por %p126, %p127
      %p129 = scmp.ne.s32.totalorder %s118, %s121
      %p130 = scmp.eq.s32.totalorder %s28, 3
      %p131 = por %p129, %p130
      %p132 = scmp.ne.s32.totalorder %s121, %s122
      %p133 = scmp.eq.s32.totalorder %s28, 0
      %p134 = por %p132, %p133
      %p135 = scmp.ne.s32.totalorder %s121, %s122
      %p136 = scmp.eq.s32.totalorder %s29, 3
      %p137 = por %p135, %p136
      %p139 = scmp.ne.s32.totalorder %s122, %s138
      %p140 = scmp.eq.s32.totalorder %s29, 0
      %p141 = por %p139, %p140
      %s142 = ssub.s32 %s31, %s38
      %p143 = scmp.eq.s32.totalorder %s142, 0
      %s145 = sadd.s32 %s144, 1
      %s146 = scalar_select %p143, %s144, %s145
      %p149 = pneg %p143
      %p150 = scmp.eq.s32.totalorder %s23, 3
      %p151 = por %p149, %p150
      %p152 = scmp.ne.s32.totalorder %s144, %s147
      %p153 = scmp.eq.s32.totalorder %s23, 0
      %p154 = por %p152, %p153
      %p155 = scmp.ne.s32.totalorder %s144, %s147
      %p156 = scmp.eq.s32.totalorder %s28, 3
      %p157 = por %p155, %p156
      %p158 = scmp.ne.s32.totalorder %s147, %s148
      %p159 = scmp.eq.s32.totalorder %s28, 0
      %p160 = por %p158, %p159
      %p161 = scmp.ne.s32.totalorder %s147, %s148
      %p162 = scmp.eq.s32.totalorder %s29, 3
      %p163 = por %p161, %p162
      %p165 = scmp.ne.s32.totalorder %s148, %s164
      %p166 = scmp.eq.s32.totalorder %s29, 0
      %p167 = por %p165, %p166
      %s168 = ssub.s32 %s30, %s42
      %p169 = scmp.eq.s32.totalorder %s168, 0
      %s171 = sadd.s32 %s170, 1
      %s172 = scalar_select %p169, %s170, %s171
      %p175 = pneg %p169
      %p176 = scmp.eq.s32.totalorder %s23, 3
      %p177 = por %p175, %p176
      %p178 = scmp.ne.s32.totalorder %s170, %s173
      %p179 = scmp.eq.s32.totalorder %s23, 0
      %p180 = por %p178, %p179
      %p181 = scmp.ne.s32.totalorder %s170, %s173
      %p182 = scmp.eq.s32.totalorder %s28, 3
      %p183 = por %p181, %p182
      %p184 = scmp.ne.s32.totalorder %s173, %s174
      %p185 = scmp.eq.s32.totalorder %s28, 0
      %p186 = por %p184, %p185
      %p187 = scmp.ne.s32.totalorder %s173, %s174
      %p188 = scmp.eq.s32.totalorder %s29, 3
      %p189 = por %p187, %p188
      %p191 = scmp.ne.s32.totalorder %s174, %s190
      %p192 = scmp.eq.s32.totalorder %s29, 0
      %p193 = por %p191, %p192
      %p194 = scmp.le.s32.totalorder 1, %s23
      %p195 = scmp.lt.s32.totalorder %s23, 5
      %p196 = pnand %p194, %p195
      %p197 = pneg %p196
      // Predicated region
      $region9: #{tpu_custom_call.1} parent=5 // pred_check
        _
      $region10: #{tpu_custom_call.1} parent=5 // pred_check_branch
        %199 = sbr.rel (%p196) target = $region12
      $region11: #{tpu_custom_call.1} parent=5 // pred_region
        %s200 = ssub.s32 %s23, 1
        // Predicated region
        $region13: #{tpu_custom_call.1} parent=11 // pred_check
          %p201 = pneg %p82
        $region14: #{tpu_custom_call.1} parent=11 // pred_check_branch
          %203 = sbr.rel (%p201) target = $region16
        $region15: #{tpu_custom_call.1} parent=11 // pred_region
          _
        $region16: #{tpu_custom_call.1} parent=11 // pred_fallthru
          _
      $region12: #{tpu_custom_call.1} parent=5 // pred_fallthru
        _
      %p204 = scmp.lt.s32.totalorder %s23, 4
      // Predicated region
      $region17: #{tpu_custom_call.1} parent=5 // pred_check
        %p205 = pneg %p204
      $region18: #{tpu_custom_call.1} parent=5 // pred_check_branch
        %207 = sbr.rel (%p205) target = $region20
      $region19: #{tpu_custom_call.1} parent=5 // pred_region
        // Predicated region
        $region21: #{tpu_custom_call.1} parent=19 // pred_check
          %p208 = pneg %p55
        $region22: #{tpu_custom_call.1} parent=19 // pred_check_branch
          %210 = sbr.rel (%p208) target = $region24
        $region23: #{tpu_custom_call.1} parent=19 // pred_region
          %s211 = sand.u32 %s45, 1
          %s212 = scalar_lea.sflag [#allocation5], %s211
          %s213 = sand.u32 %s45, 1
          %s214 = smul.addr %s213, 64
          %s215 = scalar_lea.vmem [#allocation4], %s214
          %s216 = smul.u32 8, %s30
          %s218 = ssub.s32 1024, 1024
          %219 = vsyncadd %s212, %s218
          %s220 = smul.addr %s216, 128
          %s221 = scalar_lea.hbm %s0, %s220
          %s222 = sshll.u32 %s215, 4
          %s223 = int_to_ptr.vmem [resolvable:$true] %s222
          %228 = dma.hbm_to_vmem [thread:$0]  %s221, 1024, %s223, %s212, 128, 128, 8
        $region24: #{tpu_custom_call.1} parent=19 // pred_fallthru
          _
        // Predicated region
        $region25: #{tpu_custom_call.1} parent=19 // pred_check
          %p229 = pneg %p102
        $region26: #{tpu_custom_call.1} parent=19 // pred_check_branch
          %231 = sbr.rel (%p229) target = $region28
        $region27: #{tpu_custom_call.1} parent=19 // pred_region
          %s232 = sand.u32 %s23, 1
          %s233 = scalar_lea.sflag [#allocation8], %s232
          %s234 = sand.u32 %s92, 1
          %s235 = smul.addr %s234, 256
          %s236 = scalar_lea.vmem [#allocation7], %s235
          %s237 = smul.u32 2, %s31
          %s239 = ssub.s32 4096, 4096
          %240 = vsyncadd %s233, %s239
          %s241 = smul.addr %s237, 128
          %s242 = scalar_lea.hbm %s2, %s241
          %s243 = sshll.u32 %s236, 4
          %s244 = int_to_ptr.vmem [resolvable:$true] %s243
          %249 = dma.hbm_to_vmem [thread:$0]  %s242, 4096, %s244, %s233, 512, 256, 16
        $region28: #{tpu_custom_call.1} parent=19 // pred_fallthru
          _
        // Predicated region
        $region29: #{tpu_custom_call.1} parent=19 // pred_check
          %p250 = pneg %p128
        $region30: #{tpu_custom_call.1} parent=19 // pred_check_branch
          %252 = sbr.rel (%p250) target = $region32
        $region31: #{tpu_custom_call.1} parent=19 // pred_region
          %s253 = sand.u32 %s23, 1
          %s254 = scalar_lea.sflag [#allocation8], %s253
          %s255 = sand.u32 %s118, 1
          %s256 = smul.addr %s255, 256
          %s257 = scalar_lea.vmem [#allocation9], %s256
          %s258 = smul.u32 2, %s31
          %s260 = ssub.s32 4096, 4096
          %261 = vsyncadd %s254, %s260
          %s262 = smul.addr %s258, 128
          %s263 = scalar_lea.hbm %s3, %s262
          %s264 = sshll.u32 %s257, 4
          %s265 = int_to_ptr.vmem [resolvable:$true] %s264
          %270 = dma.hbm_to_vmem [thread:$0]  %s263, 4096, %s265, %s254, 512, 256, 16
        $region32: #{tpu_custom_call.1} parent=19 // pred_fallthru
          _
        // Predicated region
        $region33: #{tpu_custom_call.1} parent=19 // pred_check
          %p271 = pneg %p154
        $region34: #{tpu_custom_call.1} parent=19 // pred_check_branch
          %273 = sbr.rel (%p271) target = $region36
        $region35: #{tpu_custom_call.1} parent=19 // pred_region
          %s274 = sand.u32 %s144, 1
          %s275 = scalar_lea.sflag [#allocation11], %s274
          %s276 = sand.u32 %s144, 1
          %s277 = smul.addr %s276, 256
          %s278 = scalar_lea.vmem [#allocation10], %s277
          %s279 = smul.u32 32, %s31
          %s281 = ssub.s32 4096, 4096
          %282 = vsyncadd %s275, %s281
          %s283 = smul.addr %s279, 128
          %s284 = scalar_lea.hbm %s4, %s283
          %s285 = sshll.u32 %s278, 4
          %s286 = int_to_ptr.vmem [resolvable:$true] %s285
          %291 = dma.hbm_to_vmem [thread:$0]  %s284, 4096, %s286, %s275, 128, 128, 8
        $region36: #{tpu_custom_call.1} parent=19 // pred_fallthru
          _
      $region20: #{tpu_custom_call.1} parent=5 // pred_fallthru
        _
      %p292 = scmp.le.s32.totalorder 1, %s23
      %p293 = scmp.lt.s32.totalorder %s23, 5
      %p294 = pnand %p292, %p293
      %p295 = pneg %p294
      // Predicated region
      $region37: #{tpu_custom_call.1} parent=5 // pred_check
        _
      $region38: #{tpu_custom_call.1} parent=5 // pred_check_branch
        %297 = sbr.rel (%p294) target = $region40
      $region39: #{tpu_custom_call.1} parent=5 // pred_region
        %s298 = ssub.s32 %s23, 1
        %s299 = sand.u32 %s48, 1
        %s300 = scalar_lea.sflag [#allocation5], %s299
        %s301 = sand.u32 %s48, 1
        %s302 = smul.addr %s301, 64
        %s303 = scalar_lea.vmem [#allocation4], %s302
        // Predicated region
        $region41: #{tpu_custom_call.1} parent=39 // pred_check
          %p304 = pneg %p61
        $region42: #{tpu_custom_call.1} parent=39 // pred_check_branch
          %306 = sbr.rel (%p304) target = $region44
        $region43: #{tpu_custom_call.1} parent=39 // pred_region
          %307 = dma.done %s300, 1024
        $region44: #{tpu_custom_call.1} parent=39 // pred_fallthru
          _
        %s308 = sand.u32 %s28, 1
        %s309 = scalar_lea.sflag [#allocation8], %s308
        %s310 = sand.u32 %s95, 1
        %s311 = smul.addr %s310, 256
        %s312 = scalar_lea.vmem [#allocation7], %s311
        // Predicated region
        $region45: #{tpu_custom_call.1} parent=39 // pred_check
          %p313 = pneg %p108
        $region46: #{tpu_custom_call.1} parent=39 // pred_check_branch
          %315 = sbr.rel (%p313) target = $region48
        $region47: #{tpu_custom_call.1} parent=39 // pred_region
          %316 = dma.done %s309, 4096
        $region48: #{tpu_custom_call.1} parent=39 // pred_fallthru
          _
        %s317 = sand.u32 %s28, 1
        %s318 = scalar_lea.sflag [#allocation8], %s317
        %s319 = sand.u32 %s121, 1
        %s320 = smul.addr %s319, 256
        %s321 = scalar_lea.vmem [#allocation9], %s320
        // Predicated region
        $region49: #{tpu_custom_call.1} parent=39 // pred_check
          %p322 = pneg %p134
        $region50: #{tpu_custom_call.1} parent=39 // pred_check_branch
          %324 = sbr.rel (%p322) target = $region52
        $region51: #{tpu_custom_call.1} parent=39 // pred_region
          %325 = dma.done %s318, 4096
        $region52: #{tpu_custom_call.1} parent=39 // pred_fallthru
          _
        %s326 = sand.u32 %s147, 1
        %s327 = scalar_lea.sflag [#allocation11], %s326
        %s328 = sand.u32 %s147, 1
        %s329 = smul.addr %s328, 256
        %s330 = scalar_lea.vmem [#allocation10], %s329
        // Predicated region
        $region53: #{tpu_custom_call.1} parent=39 // pred_check
          %p331 = pneg %p160
        $region54: #{tpu_custom_call.1} parent=39 // pred_check_branch
          %333 = sbr.rel (%p331) target = $region56
        $region55: #{tpu_custom_call.1} parent=39 // pred_region
          %334 = dma.done %s327, 4096
        $region56: #{tpu_custom_call.1} parent=39 // pred_fallthru
          _
        %s335 = sand.u32 %s48, 1
        %s336 = scalar_lea.sflag [#allocation5], %s335
        %s337 = sand.u32 %s48, 1
        %s338 = smul.addr %s337, 64
        %s339 = scalar_lea.vmem [#allocation4], %s338
        %p340 = pneg %p61
        %p341 = pneg %p58
        %p342 = pneg %p82
        %p343 = pneg %p79
        %s344 = sand.u32 %s28, 1
        %s345 = scalar_lea.sflag [#allocation8], %s344
        %s346 = sand.u32 %s95, 1
        %s347 = smul.addr %s346, 256
        %s348 = scalar_lea.vmem [#allocation7], %s347
        %p349 = pneg %p108
        %p350 = pneg %p105
        %s351 = sand.u32 %s28, 1
        %s352 = scalar_lea.sflag [#allocation8], %s351
        %s353 = sand.u32 %s121, 1
        %s354 = smul.addr %s353, 256
        %s355 = scalar_lea.vmem [#allocation9], %s354
        %p356 = pneg %p134
        %p357 = pneg %p131
        %s358 = sand.u32 %s147, 1
        %s359 = scalar_lea.sflag [#allocation11], %s358
        %s360 = sand.u32 %s147, 1
        %s361 = smul.addr %s360, 256
        %s362 = scalar_lea.vmem [#allocation10], %s361
        %p363 = pneg %p160
        %p364 = pneg %p157
        %p365 = pneg %p186
        %p366 = pneg %p183
        %s367 = sand.u32 %s173, 1
        %s368 = scalar_lea.sflag [#allocation6], %s367
        %s369 = sand.u32 %s173, 1
        %s370 = smul.addr %s369, 64
        %s371 = scalar_lea.vmem [#allocation12], %s370
        %s372 = smul.u32 8, %s32
        %s373 = smul.u32 2, %s33
        %s374 = smul.u32 2, %s33
        %s375 = smul.u32 32, %s33
        %s376 = smul.u32 8, %s32
        %p377 = scmp.eq.s32.totalorder %s33, 0
        // Predicated region
        $region57: #{tpu_custom_call.1} parent=39 // pred_check
          %p378 = pneg %p377
        $region58: #{tpu_custom_call.1} parent=39 // pred_check_branch
          %380 = sbr.rel (%p378) target = $region60
        $region59: #{tpu_custom_call.1} parent=39 // pred_region
          %381 = vst [vmem:[#allocation3] sm:$0xff] 0.0
          %382 = vst [vmem:[#allocation3 + $0x8] sm:$0xff] 0.0
          %383 = vst [vmem:[#allocation3 + $0x10] sm:$0xff] 0.0
          %384 = vst [vmem:[#allocation3 + $0x18] sm:$0xff] 0.0
          %385 = vst [vmem:[#allocation3 + $0x20] sm:$0xff] 0.0
          %386 = vst [vmem:[#allocation3 + $0x28] sm:$0xff] 0.0
          %387 = vst [vmem:[#allocation3 + $0x30] sm:$0xff] 0.0
          %388 = vst [vmem:[#allocation3 + $0x38] sm:$0xff] 0.0
          %v389 = vld [vmem:[%s303] sm:$0xff]
          %v390 = vld [vmem:[%s303 + $0x8] sm:$0xff]
          %v391 = vld [vmem:[%s303 + $0x10] sm:$0xff]
          %v392 = vld [vmem:[%s303 + $0x18] sm:$0xff]
          %v393 = vld [vmem:[%s303 + $0x20] sm:$0xff]
          %v394 = vld [vmem:[%s303 + $0x28] sm:$0xff]
          %v395 = vld [vmem:[%s303 + $0x30] sm:$0xff]
          %v396 = vld [vmem:[%s303 + $0x38] sm:$0xff]
          %v397 = vmul.f32 %v389, %v389
          %v398 = vmul.f32 %v390, %v390
          %v399 = vmul.f32 %v391, %v391
          %v400 = vmul.f32 %v392, %v392
          %v401 = vmul.f32 %v393, %v393
          %v402 = vmul.f32 %v394, %v394
          %v403 = vmul.f32 %v395, %v395
          %v404 = vmul.f32 %v396, %v396
          %405 = vadd.xlane.f32.xlu0 %v397
          %v406 = vpop.xlane.xlu0 %405
          %407 = vadd.xlane.f32.xlu0 %v398
          %v408 = vpop.xlane.xlu0 %407
          %409 = vadd.xlane.f32.xlu0 %v399
          %v410 = vpop.xlane.xlu0 %409
          %411 = vadd.xlane.f32.xlu0 %v400
          %v412 = vpop.xlane.xlu0 %411
          %413 = vadd.xlane.f32.xlu0 %v401
          %v414 = vpop.xlane.xlu0 %413
          %415 = vadd.xlane.f32.xlu0 %v402
          %v416 = vpop.xlane.xlu0 %415
          %417 = vadd.xlane.f32.xlu0 %v403
          %v418 = vpop.xlane.xlu0 %417
          %419 = vadd.xlane.f32.xlu0 %v404
          %v420 = vpop.xlane.xlu0 %419
          %v421 = vrcp.pop 128.0
          %v422 = vmul.f32 %v406, %v421
          %v423 = vmul.f32 %v408, %v421
          %v424 = vmul.f32 %v410, %v421
          %v425 = vmul.f32 %v412, %v421
          %v426 = vmul.f32 %v414, %v421
          %v427 = vmul.f32 %v416, %v421
          %v428 = vmul.f32 %v418, %v421
          %v429 = vmul.f32 %v420, %v421
          %v430 = vadd.f32 %v422, 1e-06
          %v431 = vadd.f32 %v423, 1e-06
          %v432 = vadd.f32 %v424, 1e-06
          %v433 = vadd.f32 %v425, 1e-06
          %v434 = vadd.f32 %v426, 1e-06
          %v435 = vadd.f32 %v427, 1e-06
          %v436 = vadd.f32 %v428, 1e-06
          %v437 = vadd.f32 %v429, 1e-06
          %v438 = vrsqrt.pop %v430
          %v439 = vrsqrt.pop %v431
          %v440 = vrsqrt.pop %v432
          %v441 = vrsqrt.pop %v433
          %v442 = vrsqrt.pop %v434
          %v443 = vrsqrt.pop %v435
          %v444 = vrsqrt.pop %v436
          %v445 = vrsqrt.pop %v437
          %v446 = vmul.f32 %v389, %v438
          %v447 = vmul.f32 %v390, %v439
          %v448 = vmul.f32 %v391, %v440
          %v449 = vmul.f32 %v392, %v441
          %v450 = vmul.f32 %v393, %v442
          %v451 = vmul.f32 %v394, %v443
          %v452 = vmul.f32 %v395, %v444
          %v453 = vmul.f32 %v396, %v445
          %v454 = vld [vmem:[%s1] sm:$0x1]
          %v456 = vlaneseq
          %v457 = vshrl.u32 %v456, 7
          %v458 = vsub.s32 0, %v457
          %v459 = vrot.slane %v454, %v458
          %v461 = vmul.f32 %v446, %v459
          %v462 = vmul.f32 %v447, %v459
          %v463 = vmul.f32 %v448, %v459
          %v464 = vmul.f32 %v449, %v459
          %v465 = vmul.f32 %v450, %v459
          %v466 = vmul.f32 %v451, %v459
          %v467 = vmul.f32 %v452, %v459
          %v468 = vmul.f32 %v453, %v459
          %469 = vst [vmem:[#allocation2] sm:$0xff] %v461
          %470 = vst [vmem:[#allocation2 + $0x8] sm:$0xff] %v462
          %471 = vst [vmem:[#allocation2 + $0x10] sm:$0xff] %v463
          %472 = vst [vmem:[#allocation2 + $0x18] sm:$0xff] %v464
          %473 = vst [vmem:[#allocation2 + $0x20] sm:$0xff] %v465
          %474 = vst [vmem:[#allocation2 + $0x28] sm:$0xff] %v466
          %475 = vst [vmem:[#allocation2 + $0x30] sm:$0xff] %v467
          %476 = vst [vmem:[#allocation2 + $0x38] sm:$0xff] %v468
        $region60: #{tpu_custom_call.1} parent=39 // pred_fallthru
          _
        %v477 = vld [vmem:[#allocation2] sm:$0xff]
        %v478 = vld [vmem:[#allocation2 + $0x8] sm:$0xff]
        %v479 = vld [vmem:[#allocation2 + $0x10] sm:$0xff]
        %v480 = vld [vmem:[#allocation2 + $0x18] sm:$0xff]
        %v481 = vld [vmem:[#allocation2 + $0x20] sm:$0xff]
        %v482 = vld [vmem:[#allocation2 + $0x28] sm:$0xff]
        %v483 = vld [vmem:[#allocation2 + $0x30] sm:$0xff]
        %v484 = vld [vmem:[#allocation2 + $0x38] sm:$0xff]
        %v485 = vld [vmem:[%s312] sm:$0xff]
        %v486 = vld [vmem:[%s312 + $0x8] sm:$0xff]
        %v487 = vld [vmem:[%s312 + $0x10] sm:$0xff]
        %v488 = vld [vmem:[%s312 + $0x18] sm:$0xff]
        %v489 = vld [vmem:[%s312 + $0x20] sm:$0xff]
        %v490 = vld [vmem:[%s312 + $0x28] sm:$0xff]
        %v491 = vld [vmem:[%s312 + $0x30] sm:$0xff]
        %v492 = vld [vmem:[%s312 + $0x38] sm:$0xff]
        %v493 = vld [vmem:[%s312 + $0x40] sm:$0xff]
        %v494 = vld [vmem:[%s312 + $0x48] sm:$0xff]
        %v495 = vld [vmem:[%s312 + $0x50] sm:$0xff]
        %v496 = vld [vmem:[%s312 + $0x58] sm:$0xff]
        %v497 = vld [vmem:[%s312 + $0x60] sm:$0xff]
        %v498 = vld [vmem:[%s312 + $0x68] sm:$0xff]
        %v499 = vld [vmem:[%s312 + $0x70] sm:$0xff]
        %v500 = vld [vmem:[%s312 + $0x78] sm:$0xff]
        %v501 = vld [vmem:[%s312 + $0x80] sm:$0xff]
        %v502 = vld [vmem:[%s312 + $0x88] sm:$0xff]
        %v503 = vld [vmem:[%s312 + $0x90] sm:$0xff]
        %v504 = vld [vmem:[%s312 + $0x98] sm:$0xff]
        %v505 = vld [vmem:[%s312 + $0xa0] sm:$0xff]
        %v506 = vld [vmem:[%s312 + $0xa8] sm:$0xff]
        %v507 = vld [vmem:[%s312 + $0xb0] sm:$0xff]
        %v508 = vld [vmem:[%s312 + $0xb8] sm:$0xff]
        %v509 = vld [vmem:[%s312 + $0xc0] sm:$0xff]
        %v510 = vld [vmem:[%s312 + $0xc8] sm:$0xff]
        %v511 = vld [vmem:[%s312 + $0xd0] sm:$0xff]
        %v512 = vld [vmem:[%s312 + $0xd8] sm:$0xff]
        %v513 = vld [vmem:[%s312 + $0xe0] sm:$0xff]
        %v514 = vld [vmem:[%s312 + $0xe8] sm:$0xff]
        %v515 = vld [vmem:[%s312 + $0xf0] sm:$0xff]
        %v516 = vld [vmem:[%s312 + $0xf8] sm:$0xff]
        %517 = vmatprep.subr.mxu0 %v486
        %518 = vmatpush1.msra.mxu0 %v485
        %519 = vmatprep.subr.mxu0 %v488
        %520 = vmatpush1.msra.mxu0 %v487
        %521 = vmatprep.subr.mxu0 %v490
        %522 = vmatpush1.msra.mxu0 %v489
        %523 = vmatprep.subr.mxu0 %v492
        %524 = vmatpush1.msra.mxu0 %v491
        %525 = vmatprep.subr.mxu0 %v494
        %526 = vmatpush1.msra.mxu0 %v493
        %527 = vmatprep.subr.mxu0 %v496
        %528 = vmatpush1.msra.mxu0 %v495
        %529 = vmatprep.subr.mxu0 %v498
        %530 = vmatpush1.msra.mxu0 %v497
        %531 = vmatprep.subr.mxu0 %v500
        %532 = vmatpush1.msra.mxu0 %v499
        %533 = vmatprep.subr.mxu0 %v502
        %534 = vmatpush1.msra.mxu0 %v501
        %535 = vmatprep.subr.mxu0 %v504
        %536 = vmatpush1.msra.mxu0 %v503
        %537 = vmatprep.subr.mxu0 %v506
        %538 = vmatpush1.msra.mxu0 %v505
        %539 = vmatprep.subr.mxu0 %v508
        %540 = vmatpush1.msra.mxu0 %v507
        %541 = vmatprep.subr.mxu0 %v510
        %542 = vmatpush1.msra.mxu0 %v509
        %543 = vmatprep.subr.mxu0 %v512
        %544 = vmatpush1.msra.mxu0 %v511
        %545 = vmatprep.subr.mxu0 %v514
        %546 = vmatpush1.msra.mxu0 %v513
        %547 = vmatprep.subr.mxu0 %v516
        %548 = vmatpush1.msra.mxu0 %v515
        %549 = vmatprep.subr.mxu0 0.0
        %550 = vmatpush1.msra.mxu0 0.0
        %551 = vmatprep.subr.mxu0 0.0
        %552 = vmatpush1.msra.mxu0 0.0
        %553 = vmatprep.subr.mxu0 0.0
        %554 = vmatpush1.msra.mxu0 0.0
        %555 = vmatprep.subr.mxu0 0.0
        %556 = vmatpush1.msra.mxu0 0.0
        %557 = vmatprep.subr.mxu0 0.0
        %558 = vmatpush1.msra.mxu0 0.0
        %559 = vmatprep.subr.mxu0 0.0
        %560 = vmatpush1.msra.mxu0 0.0
        %561 = vmatprep.subr.mxu0 0.0
        %562 = vmatpush1.msra.mxu0 0.0
        %563 = vmatprep.subr.mxu0 0.0
        %564 = vmatpush1.msra.mxu0 0.0
        %565 = vmatprep.subr.mxu0 0.0
        %566 = vmatpush1.msra.mxu0 0.0
        %567 = vmatprep.subr.mxu0 0.0
        %568 = vmatpush1.msra.mxu0 0.0
        %569 = vmatprep.subr.mxu0 0.0
        %570 = vmatpush1.msra.mxu0 0.0
        %571 = vmatprep.subr.mxu0 0.0
        %572 = vmatpush1.msra.mxu0 0.0
        %573 = vmatprep.subr.mxu0 0.0
        %574 = vmatpush1.msra.mxu0 0.0
        %575 = vmatprep.subr.mxu0 0.0
        %576 = vmatpush1.msra.mxu0 0.0
        %577 = vmatprep.subr.mxu0 0.0
        %578 = vmatpush1.msra.mxu0 0.0
        %579 = vmatprep.subr.mxu0 0.0
        %580 = vmatpush1.msra.mxu0 0.0
        %581 = vmatprep.mubr.f32.mxu0 0.0
        %582 = vmatmul.mubr.f32.gmra.mrb[0].mxu0 %v477
        %v583 = vpop.f32.mrb[0].mxu0
        %v584 = vadd.f32 0.0, %v583
        %v585 = vpop.f32.mrb[0].mxu0
        %v586 = vadd.f32 0.0, %v585
        %587 = vmatprep.mubr.f32.mxu0 0.0
        %588 = vmatmul.mubr.f32.gmra.mrb[0].mxu0 %v478
        %v589 = vpop.f32.mrb[0].mxu0
        %v590 = vadd.f32 0.0, %v589
        %v591 = vpop.f32.mrb[0].mxu0
        %v592 = vadd.f32 0.0, %v591
        %593 = vmatprep.mubr.f32.mxu0 0.0
        %594 = vmatmul.mubr.f32.gmra.mrb[0].mxu0 %v479
        %v595 = vpop.f32.mrb[0].mxu0
        %v596 = vadd.f32 0.0, %v595
        %v597 = vpop.f32.mrb[0].mxu0
        %v598 = vadd.f32 0.0, %v597
        %599 = vmatprep.mubr.f32.mxu0 0.0
        %600 = vmatmul.mubr.f32.gmra.mrb[0].mxu0 %v480
        %v601 = vpop.f32.mrb[0].mxu0
        %v602 = vadd.f32 0.0, %v601
        %v603 = vpop.f32.mrb[0].mxu0
        %v604 = vadd.f32 0.0, %v603
        %605 = vmatprep.mubr.f32.mxu0 0.0
        %606 = vmatmul.mubr.f32.gmra.mrb[0].mxu0 %v481
        %v607 = vpop.f32.mrb[0].mxu0
        %v608 = vadd.f32 0.0, %v607
        %v609 = vpop.f32.mrb[0].mxu0
        %v610 = vadd.f32 0.0, %v609
        %611 = vmatprep.mubr.f32.mxu0 0.0
        %612 = vmatmul.mubr.f32.gmra.mrb[0].mxu0 %v482
        %v613 = vpop.f32.mrb[0].mxu0
        %v614 = vadd.f32 0.0, %v613
        %v615 = vpop.f32.mrb[0].mxu0
        %v616 = vadd.f32 0.0, %v615
        %617 = vmatprep.mubr.f32.mxu0 0.0
        %618 = vmatmul.mubr.f32.gmra.mrb[0].mxu0 %v483
        %v619 = vpop.f32.mrb[0].mxu0
        %v620 = vadd.f32 0.0, %v619
        %v621 = vpop.f32.mrb[0].mxu0
        %v622 = vadd.f32 0.0, %v621
        %623 = vmatprep.mubr.f32.mxu0 0.0
        %624 = vmatmul.mubr.f32.gmra.mrb[0].mxu0 %v484
        %v625 = vpop.f32.mrb[0].mxu0
        %v626 = vadd.f32 0.0, %v625
        %v627 = vpop.f32.mrb[0].mxu0
        %v628 = vadd.f32 0.0, %v627
        %629 = vdwg.mxu0
        %v630 = vld [vmem:[%s321] sm:$0xff]
        %v631 = vld [vmem:[%s321 + $0x8] sm:$0xff]
        %v632 = vld [vmem:[%s321 + $0x10] sm:$0xff]
        %v633 = vld [vmem:[%s321 + $0x18] sm:$0xff]
        %v634 = vld [vmem:[%s321 + $0x20] sm:$0xff]
        %v635 = vld [vmem:[%s321 + $0x28] sm:$0xff]
        %v636 = vld [vmem:[%s321 + $0x30] sm:$0xff]
        %v637 = vld [vmem:[%s321 + $0x38] sm:$0xff]
        %v638 = vld [vmem:[%s321 + $0x40] sm:$0xff]
        %v639 = vld [vmem:[%s321 + $0x48] sm:$0xff]
        %v640 = vld [vmem:[%s321 + $0x50] sm:$0xff]
        %v641 = vld [vmem:[%s321 + $0x58] sm:$0xff]
        %v642 = vld [vmem:[%s321 + $0x60] sm:$0xff]
        %v643 = vld [vmem:[%s321 + $0x68] sm:$0xff]
        %v644 = vld [vmem:[%s321 + $0x70] sm:$0xff]
        %v645 = vld [vmem:[%s321 + $0x78] sm:$0xff]
        %v646 = vld [vmem:[%s321 + $0x80] sm:$0xff]
        %v647 = vld [vmem:[%s321 + $0x88] sm:$0xff]
        %v648 = vld [vmem:[%s321 + $0x90] sm:$0xff]
        %v649 = vld [vmem:[%s321 + $0x98] sm:$0xff]
        %v650 = vld [vmem:[%s321 + $0xa0] sm:$0xff]
        %v651 = vld [vmem:[%s321 + $0xa8] sm:$0xff]
        %v652 = vld [vmem:[%s321 + $0xb0] sm:$0xff]
        %v653 = vld [vmem:[%s321 + $0xb8] sm:$0xff]
        %v654 = vld [vmem:[%s321 + $0xc0] sm:$0xff]
        %v655 = vld [vmem:[%s321 + $0xc8] sm:$0xff]
        %v656 = vld [vmem:[%s321 + $0xd0] sm:$0xff]
        %v657 = vld [vmem:[%s321 + $0xd8] sm:$0xff]
        %v658 = vld [vmem:[%s321 + $0xe0] sm:$0xff]
        %v659 = vld [vmem:[%s321 + $0xe8] sm:$0xff]
        %v660 = vld [vmem:[%s321 + $0xf0] sm:$0xff]
        %v661 = vld [vmem:[%s321 + $0xf8] sm:$0xff]
        %662 = vmatprep.subr.mxu0 %v631
        %663 = vmatpush1.msra.mxu0 %v630
        %664 = vmatprep.subr.mxu0 %v633
        %665 = vmatpush1.msra.mxu0 %v632
        %666 = vmatprep.subr.mxu0 %v635
        %667 = vmatpush1.msra.mxu0 %v634
        %668 = vmatprep.subr.mxu0 %v637
        %669 = vmatpush1.msra.mxu0 %v636
        %670 = vmatprep.subr.mxu0 %v639
        %671 = vmatpush1.msra.mxu0 %v638
        %672 = vmatprep.subr.mxu0 %v641
        %673 = vmatpush1.msra.mxu0 %v640
        %674 = vmatprep.subr.mxu0 %v643
        %675 = vmatpush1.msra.mxu0 %v642
        %676 = vmatprep.subr.mxu0 %v645
        %677 = vmatpush1.msra.mxu0 %v644
        %678 = vmatprep.subr.mxu0 %v647
        %679 = vmatpush1.msra.mxu0 %v646
        %680 = vmatprep.subr.mxu0 %v649
        %681 = vmatpush1.msra.mxu0 %v648
        %682 = vmatprep.subr.mxu0 %v651
        %683 = vmatpush1.msra.mxu0 %v650
        %684 = vmatprep.subr.mxu0 %v653
        %685 = vmatpush1.msra.mxu0 %v652
        %686 = vmatprep.subr.mxu0 %v655
        %687 = vmatpush1.msra.mxu0 %v654
        %688 = vmatprep.subr.mxu0 %v657
        %689 = vmatpush1.msra.mxu0 %v656
        %690 = vmatprep.subr.mxu0 %v659
        %691 = vmatpush1.msra.mxu0 %v658
        %692 = vmatprep.subr.mxu0 %v661
        %693 = vmatpush1.msra.mxu0 %v660
        %694 = vmatprep.subr.mxu0 0.0
        %695 = vmatpush1.msra.mxu0 0.0
        %696 = vmatprep.subr.mxu0 0.0
        %697 = vmatpush1.msra.mxu0 0.0
        %698 = vmatprep.subr.mxu0 0.0
        %699 = vmatpush1.msra.mxu0 0.0
        %700 = vmatprep.subr.mxu0 0.0
        %701 = vmatpush1.msra.mxu0 0.0
        %702 = vmatprep.subr.mxu0 0.0
        %703 = vmatpush1.msra.mxu0 0.0
        %704 = vmatprep.subr.mxu0 0.0
        %705 = vmatpush1.msra.mxu0 0.0
        %706 = vmatprep.subr.mxu0 0.0
        %707 = vmatpush1.msra.mxu0 0.0
        %708 = vmatprep.subr.mxu0 0.0
        %709 = vmatpush1.msra.mxu0 0.0
        %710 = vmatprep.subr.mxu0 0.0
        %711 = vmatpush1.msra.mxu0 0.0
        %712 = vmatprep.subr.mxu0 0.0
        %713 = vmatpush1.msra.mxu0 0.0
        %714 = vmatprep.subr.mxu0 0.0
        %715 = vmatpush1.msra.mxu0 0.0
        %716 = vmatprep.subr.mxu0 0.0
        %717 = vmatpush1.msra.mxu0 0.0
        %718 = vmatprep.subr.mxu0 0.0
        %719 = vmatpush1.msra.mxu0 0.0
        %720 = vmatprep.subr.mxu0 0.0
        %721 = vmatpush1.msra.mxu0 0.0
        %722 = vmatprep.subr.mxu0 0.0
        %723 = vmatpush1.msra.mxu0 0.0
        %724 = vmatprep.subr.mxu0 0.0
        %725 = vmatpush1.msra.mxu0 0.0
        %726 = vmatprep.mubr.f32.mxu0 0.0
        %727 = vmatmul.mubr.f32.gmra.mrb[0].mxu0 %v477
        %v728 = vpop.f32.mrb[0].mxu0
        %v729 = vadd.f32 0.0, %v728
        %v730 = vpop.f32.mrb[0].mxu0
        %v731 = vadd.f32 0.0, %v730
        %732 = vmatprep.mubr.f32.mxu0 0.0
        %733 = vmatmul.mubr.f32.gmra.mrb[0].mxu0 %v478
        %v734 = vpop.f32.mrb[0].mxu0
        %v735 = vadd.f32 0.0, %v734
        %v736 = vpop.f32.mrb[0].mxu0
        %v737 = vadd.f32 0.0, %v736
        %738 = vmatprep.mubr.f32.mxu0 0.0
        %739 = vmatmul.mubr.f32.gmra.mrb[0].mxu0 %v479
        %v740 = vpop.f32.mrb[0].mxu0
        %v741 = vadd.f32 0.0, %v740
        %v742 = vpop.f32.mrb[0].mxu0
        %v743 = vadd.f32 0.0, %v742
        %744 = vmatprep.mubr.f32.mxu0 0.0
        %745 = vmatmul.mubr.f32.gmra.mrb[0].mxu0 %v480
        %v746 = vpop.f32.mrb[0].mxu0
        %v747 = vadd.f32 0.0, %v746
        %v748 = vpop.f32.mrb[0].mxu0
        %v749 = vadd.f32 0.0, %v748
        %750 = vmatprep.mubr.f32.mxu0 0.0
        %751 = vmatmul.mubr.f32.gmra.mrb[0].mxu0 %v481
        %v752 = vpop.f32.mrb[0].mxu0
        %v753 = vadd.f32 0.0, %v752
        %v754 = vpop.f32.mrb[0].mxu0
        %v755 = vadd.f32 0.0, %v754
        %756 = vmatprep.mubr.f32.mxu0 0.0
        %757 = vmatmul.mubr.f32.gmra.mrb[0].mxu0 %v482
        %v758 = vpop.f32.mrb[0].mxu0
        %v759 = vadd.f32 0.0, %v758
        %v760 = vpop.f32.mrb[0].mxu0
        %v761 = vadd.f32 0.0, %v760
        %762 = vmatprep.mubr.f32.mxu0 0.0
        %763 = vmatmul.mubr.f32.gmra.mrb[0].mxu0 %v483
        %v764 = vpop.f32.mrb[0].mxu0
        %v765 = vadd.f32 0.0, %v764
        %v766 = vpop.f32.mrb[0].mxu0
        %v767 = vadd.f32 0.0, %v766
        %768 = vmatprep.mubr.f32.mxu0 0.0
        %769 = vmatmul.mubr.f32.gmra.mrb[0].mxu0 %v484
        %v770 = vpop.f32.mrb[0].mxu0
        %v771 = vadd.f32 0.0, %v770
        %v772 = vpop.f32.mrb[0].mxu0
        %v773 = vadd.f32 0.0, %v772
        %774 = vdwg.mxu0
        %v775 = vsub.f32 0.0, %v584
        %v776 = vsub.f32 0.0, %v586
        %v777 = vsub.f32 0.0, %v590
        %v778 = vsub.f32 0.0, %v592
        %v779 = vsub.f32 0.0, %v596
        %v780 = vsub.f32 0.0, %v598
        %v781 = vsub.f32 0.0, %v602
        %v782 = vsub.f32 0.0, %v604
        %v783 = vsub.f32 0.0, %v608
        %v784 = vsub.f32 0.0, %v610
        %v785 = vsub.f32 0.0, %v614
        %v786 = vsub.f32 0.0, %v616
        %v787 = vsub.f32 0.0, %v620
        %v788 = vsub.f32 0.0, %v622
        %v789 = vsub.f32 0.0, %v626
        %v790 = vsub.f32 0.0, %v628
        %v791 = vmul.f32 %v775, 1.442695
        %v792 = vpow.pop %v791
        %v793 = vmul.f32 %v776, 1.442695
        %v794 = vpow.pop %v793
        %v795 = vmul.f32 %v777, 1.442695
        %v796 = vpow.pop %v795
        %v797 = vmul.f32 %v778, 1.442695
        %v798 = vpow.pop %v797
        %v799 = vmul.f32 %v779, 1.442695
        %v800 = vpow.pop %v799
        %v801 = vmul.f32 %v780, 1.442695
        %v802 = vpow.pop %v801
        %v803 = vmul.f32 %v781, 1.442695
        %v804 = vpow.pop %v803
        %v805 = vmul.f32 %v782, 1.442695
        %v806 = vpow.pop %v805
        %v807 = vmul.f32 %v783, 1.442695
        %v808 = vpow.pop %v807
        %v809 = vmul.f32 %v784, 1.442695
        %v810 = vpow.pop %v809
        %v811 = vmul.f32 %v785, 1.442695
        %v812 = vpow.pop %v811
        %v813 = vmul.f32 %v786, 1.442695
        %v814 = vpow.pop %v813
        %v815 = vmul.f32 %v787, 1.442695
        %v816 = vpow.pop %v815
        %v817 = vmul.f32 %v788, 1.442695
        %v818 = vpow.pop %v817
        %v819 = vmul.f32 %v789, 1.442695
        %v820 = vpow.pop %v819
        %v821 = vmul.f32 %v790, 1.442695
        %v822 = vpow.pop %v821
        %v823 = vadd.f32 %v792, 1.0
        %v824 = vadd.f32 %v794, 1.0
        %v825 = vadd.f32 %v796, 1.0
        %v826 = vadd.f32 %v798, 1.0
        %v827 = vadd.f32 %v800, 1.0
        %v828 = vadd.f32 %v802, 1.0
        %v829 = vadd.f32 %v804, 1.0
        %v830 = vadd.f32 %v806, 1.0
        %v831 = vadd.f32 %v808, 1.0
        %v832 = vadd.f32 %v810, 1.0
        %v833 = vadd.f32 %v812, 1.0
        %v834 = vadd.f32 %v814, 1.0
        %v835 = vadd.f32 %v816, 1.0
        %v836 = vadd.f32 %v818, 1.0
        %v837 = vadd.f32 %v820, 1.0
        %v838 = vadd.f32 %v822, 1.0
        %v839 = vrcp.pop %v823
        %v840 = vmul.f32 1.0, %v839
        %v841 = vrcp.pop %v824
        %v842 = vmul.f32 1.0, %v841
        %v843 = vrcp.pop %v825
        %v844 = vmul.f32 1.0, %v843
        %v845 = vrcp.pop %v826
        %v846 = vmul.f32 1.0, %v845
        %v847 = vrcp.pop %v827
        %v848 = vmul.f32 1.0, %v847
        %v849 = vrcp.pop %v828
        %v850 = vmul.f32 1.0, %v849
        %v851 = vrcp.pop %v829
        %v852 = vmul.f32 1.0, %v851
        %v853 = vrcp.pop %v830
        %v854 = vmul.f32 1.0, %v853
        %v855 = vrcp.pop %v831
        %v856 = vmul.f32 1.0, %v855
        %v857 = vrcp.pop %v832
        %v858 = vmul.f32 1.0, %v857
        %v859 = vrcp.pop %v833
        %v860 = vmul.f32 1.0, %v859
        %v861 = vrcp.pop %v834
        %v862 = vmul.f32 1.0, %v861
        %v863 = vrcp.pop %v835
        %v864 = vmul.f32 1.0, %v863
        %v865 = vrcp.pop %v836
        %v866 = vmul.f32 1.0, %v865
        %v867 = vrcp.pop %v837
        %v868 = vmul.f32 1.0, %v867
        %v869 = vrcp.pop %v838
        %v870 = vmul.f32 1.0, %v869
        %v871 = vmul.f32 %v584, %v840
        %v872 = vmul.f32 %v586, %v842
        %v873 = vmul.f32 %v590, %v844
        %v874 = vmul.f32 %v592, %v846
        %v875 = vmul.f32 %v596, %v848
        %v876 = vmul.f32 %v598, %v850
        %v877 = vmul.f32 %v602, %v852
        %v878 = vmul.f32 %v604, %v854
        %v879 = vmul.f32 %v608, %v856
        %v880 = vmul.f32 %v610, %v858
        %v881 = vmul.f32 %v614, %v860
        %v882 = vmul.f32 %v616, %v862
        %v883 = vmul.f32 %v620, %v864
        %v884 = vmul.f32 %v622, %v866
        %v885 = vmul.f32 %v626, %v868
        %v886 = vmul.f32 %v628, %v870
        %v887 = vmul.f32 %v871, %v729
        %v888 = vmul.f32 %v872, %v731
        %v889 = vmul.f32 %v873, %v735
        %v890 = vmul.f32 %v874, %v737
        %v891 = vmul.f32 %v875, %v741
        %v892 = vmul.f32 %v876, %v743
        %v893 = vmul.f32 %v877, %v747
        %v894 = vmul.f32 %v878, %v749
        %v895 = vmul.f32 %v879, %v753
        %v896 = vmul.f32 %v880, %v755
        %v897 = vmul.f32 %v881, %v759
        %v898 = vmul.f32 %v882, %v761
        %v899 = vmul.f32 %v883, %v765
        %v900 = vmul.f32 %v884, %v767
        %v901 = vmul.f32 %v885, %v771
        %v902 = vmul.f32 %v886, %v773
        %v903 = vld [vmem:[#allocation3] sm:$0xff]
        %v904 = vld [vmem:[#allocation3 + $0x8] sm:$0xff]
        %v905 = vld [vmem:[#allocation3 + $0x10] sm:$0xff]
        %v906 = vld [vmem:[#allocation3 + $0x18] sm:$0xff]
        %v907 = vld [vmem:[#allocation3 + $0x20] sm:$0xff]
        %v908 = vld [vmem:[#allocation3 + $0x28] sm:$0xff]
        %v909 = vld [vmem:[#allocation3 + $0x30] sm:$0xff]
        %v910 = vld [vmem:[#allocation3 + $0x38] sm:$0xff]
        %v911 = vld [vmem:[%s330] sm:$0xff]
        %v912 = vld [vmem:[%s330 + $0x8] sm:$0xff]
        %v913 = vld [vmem:[%s330 + $0x10] sm:$0xff]
        %v914 = vld [vmem:[%s330 + $0x18] sm:$0xff]
        %v915 = vld [vmem:[%s330 + $0x20] sm:$0xff]
        %v916 = vld [vmem:[%s330 + $0x28] sm:$0xff]
        %v917 = vld [vmem:[%s330 + $0x30] sm:$0xff]
        %v918 = vld [vmem:[%s330 + $0x38] sm:$0xff]
        %v919 = vld [vmem:[%s330 + $0x40] sm:$0xff]
        %v920 = vld [vmem:[%s330 + $0x48] sm:$0xff]
        %v921 = vld [vmem:[%s330 + $0x50] sm:$0xff]
        %v922 = vld [vmem:[%s330 + $0x58] sm:$0xff]
        %v923 = vld [vmem:[%s330 + $0x60] sm:$0xff]
        %v924 = vld [vmem:[%s330 + $0x68] sm:$0xff]
        %v925 = vld [vmem:[%s330 + $0x70] sm:$0xff]
        %v926 = vld [vmem:[%s330 + $0x78] sm:$0xff]
        %v927 = vld [vmem:[%s330 + $0x80] sm:$0xff]
        %v928 = vld [vmem:[%s330 + $0x88] sm:$0xff]
        %v929 = vld [vmem:[%s330 + $0x90] sm:$0xff]
        %v930 = vld [vmem:[%s330 + $0x98] sm:$0xff]
        %v931 = vld [vmem:[%s330 + $0xa0] sm:$0xff]
        %v932 = vld [vmem:[%s330 + $0xa8] sm:$0xff]
        %v933 = vld [vmem:[%s330 + $0xb0] sm:$0xff]
        %v934 = vld [vmem:[%s330 + $0xb8] sm:$0xff]
        %v935 = vld [vmem:[%s330 + $0xc0] sm:$0xff]
        %v936 = vld [vmem:[%s330 + $0xc8] sm:$0xff]
        %v937 = vld [vmem:[%s330 + $0xd0] sm:$0xff]
        %v938 = vld [vmem:[%s330 + $0xd8] sm:$0xff]
        %v939 = vld [vmem:[%s330 + $0xe0] sm:$0xff]
        %v940 = vld [vmem:[%s330 + $0xe8] sm:$0xff]
        %v941 = vld [vmem:[%s330 + $0xf0] sm:$0xff]
        %v942 = vld [vmem:[%s330 + $0xf8] sm:$0xff]
        %943 = vmatprep.subr.mxu0 0.0
        %944 = vmatpush1.msra.mxu0 %v911
        %945 = vmatprep.subr.mxu0 0.0
        %946 = vmatpush1.msra.mxu0 %v912
        %947 = vmatprep.subr.mxu0 0.0
        %948 = vmatpush1.msra.mxu0 %v913
        %949 = vmatprep.subr.mxu0 0.0
        %950 = vmatpush1.msra.mxu0 %v914
        %951 = vmatprep.subr.mxu0 0.0
        %952 = vmatpush1.msra.mxu0 %v915
        %953 = vmatprep.subr.mxu0 0.0
        %954 = vmatpush1.msra.mxu0 %v916
        %955 = vmatprep.subr.mxu0 0.0
        %956 = vmatpush1.msra.mxu0 %v917
        %957 = vmatprep.subr.mxu0 0.0
        %958 = vmatpush1.msra.mxu0 %v918
        %959 = vmatprep.subr.mxu0 0.0
        %960 = vmatpush1.msra.mxu0 %v919
        %961 = vmatprep.subr.mxu0 0.0
        %962 = vmatpush1.msra.mxu0 %v920
        %963 = vmatprep.subr.mxu0 0.0
        %964 = vmatpush1.msra.mxu0 %v921
        %965 = vmatprep.subr.mxu0 0.0
        %966 = vmatpush1.msra.mxu0 %v922
        %967 = vmatprep.subr.mxu0 0.0
        %968 = vmatpush1.msra.mxu0 %v923
        %969 = vmatprep.subr.mxu0 0.0
        %970 = vmatpush1.msra.mxu0 %v924
        %971 = vmatprep.subr.mxu0 0.0
        %972 = vmatpush1.msra.mxu0 %v925
        %973 = vmatprep.subr.mxu0 0.0
        %974 = vmatpush1.msra.mxu0 %v926
        %975 = vmatprep.subr.mxu0 0.0
        %976 = vmatpush1.msra.mxu0 %v927
        %977 = vmatprep.subr.mxu0 0.0
        %978 = vmatpush1.msra.mxu0 %v928
        %979 = vmatprep.subr.mxu0 0.0
        %980 = vmatpush1.msra.mxu0 %v929
        %981 = vmatprep.subr.mxu0 0.0
        %982 = vmatpush1.msra.mxu0 %v930
        %983 = vmatprep.subr.mxu0 0.0
        %984 = vmatpush1.msra.mxu0 %v931
        %985 = vmatprep.subr.mxu0 0.0
        %986 = vmatpush1.msra.mxu0 %v932
        %987 = vmatprep.subr.mxu0 0.0
        %988 = vmatpush1.msra.mxu0 %v933
        %989 = vmatprep.subr.mxu0 0.0
        %990 = vmatpush1.msra.mxu0 %v934
        %991 = vmatprep.subr.mxu0 0.0
        %992 = vmatpush1.msra.mxu0 %v935
        %993 = vmatprep.subr.mxu0 0.0
        %994 = vmatpush1.msra.mxu0 %v936
        %995 = vmatprep.subr.mxu0 0.0
        %996 = vmatpush1.msra.mxu0 %v937
        %997 = vmatprep.subr.mxu0 0.0
        %998 = vmatpush1.msra.mxu0 %v938
        %999 = vmatprep.subr.mxu0 0.0
        %1000 = vmatpush1.msra.mxu0 %v939
        %1001 = vmatprep.subr.mxu0 0.0
        %1002 = vmatpush1.msra.mxu0 %v940
        %1003 = vmatprep.subr.mxu0 0.0
        %1004 = vmatpush1.msra.mxu0 %v941
        %1005 = vmatprep.subr.mxu0 0.0
        %1006 = vmatpush1.msra.mxu0 %v942
        %1007 = vmatprep.mubr.f32.mxu0 %v888
        %1008 = vmatmul.mubr.f32.gmra.mrb[0].mxu0 %v887
        %v1009 = vpop.f32.mrb[0].mxu0
        %v1010 = vadd.f32 0.0, %v1009
        %v1011 = vpop.f32.mrb[0].mxu0
        %1012 = vmatprep.mubr.f32.mxu0 %v890
        %1013 = vmatmul.mubr.f32.gmra.mrb[0].mxu0 %v889
        %v1014 = vpop.f32.mrb[0].mxu0
        %v1015 = vadd.f32 0.0, %v1014
        %v1016 = vpop.f32.mrb[0].mxu0
        %1017 = vmatprep.mubr.f32.mxu0 %v892
        %1018 = vmatmul.mubr.f32.gmra.mrb[0].mxu0 %v891
        %v1019 = vpop.f32.mrb[0].mxu0
        %v1020 = vadd.f32 0.0, %v1019
        %v1021 = vpop.f32.mrb[0].mxu0
        %1022 = vmatprep.mubr.f32.mxu0 %v894
        %1023 = vmatmul.mubr.f32.gmra.mrb[0].mxu0 %v893
        %v1024 = vpop.f32.mrb[0].mxu0
        %v1025 = vadd.f32 0.0, %v1024
        %v1026 = vpop.f32.mrb[0].mxu0
        %1027 = vmatprep.mubr.f32.mxu0 %v896
        %1028 = vmatmul.mubr.f32.gmra.mrb[0].mxu0 %v895
        %v1029 = vpop.f32.mrb[0].mxu0
        %v1030 = vadd.f32 0.0, %v1029
        %v1031 = vpop.f32.mrb[0].mxu0
        %1032 = vmatprep.mubr.f32.mxu0 %v898
        %1033 = vmatmul.mubr.f32.gmra.mrb[0].mxu0 %v897
        %v1034 = vpop.f32.mrb[0].mxu0
        %v1035 = vadd.f32 0.0, %v1034
        %v1036 = vpop.f32.mrb[0].mxu0
        %1037 = vmatprep.mubr.f32.mxu0 %v900
        %1038 = vmatmul.mubr.f32.gmra.mrb[0].mxu0 %v899
        %v1039 = vpop.f32.mrb[0].mxu0
        %v1040 = vadd.f32 0.0, %v1039
        %v1041 = vpop.f32.mrb[0].mxu0
        %1042 = vmatprep.mubr.f32.mxu0 %v902
        %1043 = vmatmul.mubr.f32.gmra.mrb[0].mxu0 %v901
        %v1044 = vpop.f32.mrb[0].mxu0
        %v1045 = vadd.f32 0.0, %v1044
        %v1046 = vpop.f32.mrb[0].mxu0
        %1047 = vdwg.mxu0
        %v1048 = vadd.f32 %v903, %v1010
        %v1049 = vadd.f32 %v904, %v1015
        %v1050 = vadd.f32 %v905, %v1020
        %v1051 = vadd.f32 %v906, %v1025
        %v1052 = vadd.f32 %v907, %v1030
        %v1053 = vadd.f32 %v908, %v1035
        %v1054 = vadd.f32 %v909, %v1040
        %v1055 = vadd.f32 %v910, %v1045
        %1056 = vst [vmem:[#allocation3] sm:$0xff] %v1048
        %1057 = vst [vmem:[#allocation3 + $0x8] sm:$0xff] %v1049
        %1058 = vst [vmem:[#allocation3 + $0x10] sm:$0xff] %v1050
        %1059 = vst [vmem:[#allocation3 + $0x18] sm:$0xff] %v1051
        %1060 = vst [vmem:[#allocation3 + $0x20] sm:$0xff] %v1052
        %1061 = vst [vmem:[#allocation3 + $0x28] sm:$0xff] %v1053
        %1062 = vst [vmem:[#allocation3 + $0x30] sm:$0xff] %v1054
        %1063 = vst [vmem:[#allocation3 + $0x38] sm:$0xff] %v1055
        %p1064 = scmp.eq.s32.totalorder %s33, 1
        // Predicated region
        $region61: #{tpu_custom_call.1} parent=39 // pred_check
          %p1065 = pneg %p1064
        $region62: #{tpu_custom_call.1} parent=39 // pred_check_branch
          %1067 = sbr.rel (%p1065) target = $region64
        $region63: #{tpu_custom_call.1} parent=39 // pred_region
          %v1068 = vld [vmem:[#allocation3] sm:$0xff]
          %v1069 = vld [vmem:[#allocation3 + $0x8] sm:$0xff]
          %v1070 = vld [vmem:[#allocation3 + $0x10] sm:$0xff]
          %v1071 = vld [vmem:[#allocation3 + $0x18] sm:$0xff]
          %v1072 = vld [vmem:[#allocation3 + $0x20] sm:$0xff]
          %v1073 = vld [vmem:[#allocation3 + $0x28] sm:$0xff]
          %v1074 = vld [vmem:[#allocation3 + $0x30] sm:$0xff]
          %v1075 = vld [vmem:[#allocation3 + $0x38] sm:$0xff]
          %1076 = vst [vmem:[%s371] sm:$0xff] %v1068
          %1077 = vst [vmem:[%s371 + $0x8] sm:$0xff] %v1069
          %1078 = vst [vmem:[%s371 + $0x10] sm:$0xff] %v1070
          %1079 = vst [vmem:[%s371 + $0x18] sm:$0xff] %v1071
          %1080 = vst [vmem:[%s371 + $0x20] sm:$0xff] %v1072
          %1081 = vst [vmem:[%s371 + $0x28] sm:$0xff] %v1073
          %1082 = vst [vmem:[%s371 + $0x30] sm:$0xff] %v1074
          %1083 = vst [vmem:[%s371 + $0x38] sm:$0xff] %v1075
        $region64: #{tpu_custom_call.1} parent=39 // pred_fallthru
          _
        %s1084 = sand.u32 %s173, 1
        %s1085 = scalar_lea.sflag [#allocation6], %s1084
        %s1086 = sand.u32 %s173, 1
        %s1087 = smul.addr %s1086, 64
        %s1088 = scalar_lea.vmem [#allocation12], %s1087
        // Predicated region
        $region65: #{tpu_custom_call.1} parent=39 // pred_check
          %p1089 = pneg %p183
        $region66: #{tpu_custom_call.1} parent=39 // pred_check_branch
          %1091 = sbr.rel (%p1089) target = $region68
        $region67: #{tpu_custom_call.1} parent=39 // pred_region
          %s1092 = smul.u32 8, %s32
          %s1094 = ssub.s32 1024, 1024
          %1095 = vsyncadd %s1085, %s1094
          %s1096 = smul.addr %s1092, 128
          %s1097 = scalar_lea.hbm %s5, %s1096
          %s1098 = sshll.u32 %s1088, 4
          %s1099 = int_to_ptr.vmem [resolvable:$true] %s1098
          %1104 = dma.vmem_to_hbm [thread:$0]  %s1099, 1024, %s1097, %s1085, 128, 128, 8
        $region68: #{tpu_custom_call.1} parent=39 // pred_fallthru
          _
      $region40: #{tpu_custom_call.1} parent=5 // pred_fallthru
        _
      %p1105 = scmp.le.s32.totalorder 2, %s23
      // Predicated region
      $region69: #{tpu_custom_call.1} parent=5 // pred_check
        %p1106 = pneg %p1105
      $region70: #{tpu_custom_call.1} parent=5 // pred_check_branch
        %1108 = sbr.rel (%p1106) target = $region72
      $region71: #{tpu_custom_call.1} parent=5 // pred_region
        %s1109 = ssub.s32 %s23, 2
        // Predicated region
        $region73: #{tpu_custom_call.1} parent=71 // pred_check
          %p1110 = pneg %p189
        $region74: #{tpu_custom_call.1} parent=71 // pred_check_branch
          %1112 = sbr.rel (%p1110) target = $region76
        $region75: #{tpu_custom_call.1} parent=71 // pred_region
          %s1113 = sand.u32 %s174, 1
          %s1114 = scalar_lea.sflag [#allocation6], %s1113
          %s1115 = sand.u32 %s174, 1
          %s1116 = smul.addr %s1115, 64
          %s1117 = scalar_lea.vmem [#allocation12], %s1116
          %1118 = dma.done %s1114, 1024
        $region76: #{tpu_custom_call.1} parent=71 // pred_fallthru
          _
      $region72: #{tpu_custom_call.1} parent=5 // pred_fallthru
        _
    $region6: #{tpu_custom_call.1} parent=1 // loop_footer
      %s27 = sadd.s32 1, %s23
    $region7: #{tpu_custom_call.1} parent=1 // loop_footer_branch
      %22 = sbr.rel target = $region3
    $region8: #{tpu_custom_call.1} parent=1 // loop_exit
      _
    %1119 = vsyncpa [#allocation5], 1
    %s1120 = scalar_lea.sflag [#allocation5], 1
    %1121 = vsyncpa %s1120, 1
    %1122 = vsyncpa [#allocation8], 1
    %s1123 = scalar_lea.sflag [#allocation8], 1
    %1124 = vsyncpa %s1123, 1
    %1125 = vsyncpa [#allocation11], 1
    %s1126 = scalar_lea.sflag [#allocation11], 1
    %1127 = vsyncpa %s1126, 1
    %1128 = vsyncpa [#allocation6], 1
    %s1129 = scalar_lea.sflag [#allocation6], 1
    %1130 = vsyncpa %s1129, 1

</llo_original>
